<compile_context>
chip_gen: v5e
topology: v5e:2x2
jax: 0.10.0
libtpu: 0.0.40
codegen_flags: <defaults>
</compile_context>

<pallas_src>
import functools

import jax
import jax.numpy as jnp
from jax import lax
from jax.experimental import pallas as pl
from jax.experimental.pallas import tpu as pltpu


def _round_up(x, m):
    return (x + m - 1) // m * m


@functools.lru_cache(maxsize=1)
def _vmem_budget_bytes():
    """75% of physical per-core VMEM; assume 64 MiB (v7x) if unknown."""
    cap = 64 << 20
    try:
        info = pltpu.get_tpu_info()
        cap = int(getattr(info, "vmem_capacity_bytes", cap)) or cap
    except Exception:
        pass
    return int(0.75 * cap)


# ---------------------------------------------------------------------------
# Kernels: per-layer gram  G_l = h_l^T @ h_l  with f32 accumulation.
# ---------------------------------------------------------------------------

def _gram_kernel(h_ref, gram_ref, *, true_t, tile, ragged):
    """Grid (L, nt): full [I, I] f32 gram stays resident across the T axis."""
    t = pl.program_id(1)

    @pl.when(t == 0)
    def _():
        gram_ref[...] = jnp.zeros_like(gram_ref)

    h = h_ref[...]                                       # [tile, I], native dtype
    if ragged:                                           # static: only if T % tile
        row = t * tile + lax.broadcasted_iota(jnp.int32, (h.shape[0], 1), 0)
        h = jnp.where(row < true_t, h, jnp.zeros_like(h))

    # gram += h^T @ h — contract the row axis via dimension numbers (no
    # explicit transpose materialized in VMEM).
    gram_ref[...] += lax.dot_general(
        h, h, dimension_numbers=(((0,), (0,)), ((), ())),
        preferred_element_type=jnp.float32)


def _gram_blocked_kernel(hr_ref, hc_ref, gram_ref, *, true_t, tile, ragged):
    """Grid (L, nj, nt): gram blocked to [I, tn] columns (v7x / very large I)."""
    t = pl.program_id(2)

    @pl.when(t == 0)
    def _():
        gram_ref[...] = jnp.zeros_like(gram_ref)

    hr = hr_ref[...]                                     # [tile, I]
    hc = hc_ref[...]                                     # [tile, tn]
    if ragged:
        row = t * tile + lax.broadcasted_iota(jnp.int32, (hr.shape[0], 1), 0)
        valid = row < true_t
        hr = jnp.where(valid, hr, jnp.zeros_like(hr))
        hc = jnp.where(valid, hc, jnp.zeros_like(hc))

    gram_ref[...] += lax.dot_general(
        hr, hc, dimension_numbers=(((0,), (0,)), ((), ())),
        preferred_element_type=jnp.float32)


# ---------------------------------------------------------------------------
# pallas_call wrapper
# ---------------------------------------------------------------------------

def _pick_col_tile(i_size, want):
    if i_size % 128 != 0:
        return i_size
    tn = max(128, (min(want, i_size) // 128) * 128)
    while tn > 128 and i_size % tn != 0:
        tn -= 128
    return tn if i_size % tn == 0 else i_size


def span_layer_gram(h_stack, *, tile_t=512, gram_col_tile=512,
                    force_blocked=False):
    """Per-layer gram matrices G[l] = h[l]^T @ h[l] in f32, via Pallas.

    h_stack: [L, T, I] activations in their native dtype.
    Returns: [L, I, I] float32.
    """
    L, T, I = h_stack.shape
    h_bytes = jnp.dtype(h_stack.dtype).itemsize
    sub = {4: 8, 2: 16, 1: 32}.get(h_bytes, 8)       # sublane granule per dtype

    tile = min(_round_up(tile_t, sub), _round_up(T, sub))
    budget = _vmem_budget_bytes()
    margin = 4 << 20                                  # Mosaic internal scratch

    def full_cost(t_rows):
        # double-buffered h tile + (possibly double-buffered) resident gram.
        return 2 * t_rows * I * h_bytes + 2 * I * I * 4 + margin

    blocked = bool(force_blocked)
    if not blocked and full_cost(tile) > budget:
        t_try = tile
        while t_try > sub and full_cost(t_try) > budget:
            t_try = max(sub, _round_up(t_try // 2, sub))
        if full_cost(t_try) <= budget:
            tile = t_try
        else:
            blocked = True                            # full gram cannot fit

    if blocked:
        tn = _pick_col_tile(I, gram_col_tile)

        def blk_cost(t_rows):
            return (2 * t_rows * I * h_bytes + 2 * t_rows * tn * h_bytes
                    + 2 * I * tn * 4 + margin)

        while tile > sub and blk_cost(tile) > budget:
            tile = max(sub, _round_up(tile // 2, sub))

    nt = (T + tile - 1) // tile
    ragged = (nt * tile != T)
    cost = blk_cost(tile) if blocked else full_cost(tile)
    vmem_limit = int(min(max(cost, 32 << 20), budget))

    flops = 2 * L * T * I * I
    out_shape = jax.ShapeDtypeStruct((L, I, I), jnp.float32)

    if not blocked:
        kern = functools.partial(_gram_kernel, true_t=T, tile=tile, ragged=ragged)
        bytes_accessed = L * (T * I * h_bytes + I * I * 4)
        return pl.pallas_call(
            kern,
            out_shape=out_shape,
            grid_spec=pltpu.PrefetchScalarGridSpec(
                num_scalar_prefetch=0,
                grid=(L, nt),
                # layer dim squeezed (None); row tiles stream along grid axis 1
                in_specs=[pl.BlockSpec((None, tile, I), lambda l, t: (l, t, 0))],
                # constant index along t -> grid-resident f32 accumulator
                out_specs=pl.BlockSpec((None, I, I), lambda l, t: (l, 0, 0)),
            ),
            compiler_params=pltpu.CompilerParams(
                dimension_semantics=("parallel", "arbitrary"),
                vmem_limit_bytes=vmem_limit),
            cost_estimate=pl.CostEstimate(
                flops=flops, transcendentals=0, bytes_accessed=bytes_accessed),
        )(h_stack)

    nj = I // tn
    kern = functools.partial(_gram_blocked_kernel, true_t=T, tile=tile,
                             ragged=ragged)
    bytes_accessed = L * ((nj + 1) * T * I * h_bytes + I * I * 4)
    return pl.pallas_call(
        kern,
        out_shape=out_shape,
        grid_spec=pltpu.PrefetchScalarGridSpec(
            num_scalar_prefetch=0,
            grid=(L, nj, nt),
            in_specs=[
                pl.BlockSpec((None, tile, I), lambda l, j, t: (l, t, 0)),
                pl.BlockSpec((None, tile, tn), lambda l, j, t: (l, t, j)),
            ],
            out_specs=pl.BlockSpec((None, I, tn), lambda l, j, t: (l, 0, j)),
        ),
        compiler_params=pltpu.CompilerParams(
            dimension_semantics=("parallel", "parallel", "arbitrary"),
            vmem_limit_bytes=vmem_limit),
        cost_estimate=pl.CostEstimate(
            flops=flops, transcendentals=0, bytes_accessed=bytes_accessed),
    )(h_stack, h_stack)


# ---------------------------------------------------------------------------
# Jitted glue
# ---------------------------------------------------------------------------

@functools.partial(jax.jit, static_argnames=("tile_t",))
def _span_core(h_stack, a_stack, *, tile_t=512):
    """Heavy forward path: Pallas gram + algebraic recovery of the statistics."""
    L, T, I = h_stack.shape
    eye = jnp.eye(I, dtype=jnp.float32)
    a_masked = a_stack * (1.0 - eye)                  # A * (1 - eye), f32
    a_prime = a_masked - eye                          # fold "s = h@A - h" into A'

    gram = span_layer_gram(h_stack, tile_t=tile_t)    # [L, I, I] f32

    # sum_t h[t,i]^2 is exactly the gram diagonal (same f32 accumulation).
    h_sq_sum = jnp.diagonal(gram, axis1=1, axis2=2)   # [L, I]
    # sum_t s[t,j]^2 = (A'^T G A')[j,j] = sum_i A'[i,j] * (G @ A')[i,j]
    ga = jnp.matmul(gram, a_prime, precision=lax.Precision.HIGHEST)
    s_sq_sum = jnp.sum(a_prime * ga, axis=1)          # [L, I]

    total_norm = jnp.sum(s_sq_sum) / (T * I)          # sum_l (s_l ** 2).mean()
    raw_r2 = 1.0 - s_sq_sum / h_sq_sum                # [L, I]
    return total_norm, raw_r2, gram, h_sq_sum, a_masked


@jax.jit
def _finish_stats(r2_in, gram, h_sq_sum, a_masked, total_nnz_neurons):
    """Cheap [I]-sized statistics, vectorized over layers (jitted)."""
    L, I = r2_in.shape
    eye = jnp.eye(I, dtype=jnp.float32)

    r2 = jnp.nan_to_num(r2_in, nan=0.0, posinf=0.0, neginf=0.0)
    total_lt_0 = jnp.sum(r2 < 0)
    r2 = jnp.where(r2 < 0, 0.0, r2)

    contrib = jnp.abs(a_masked) > 0.01                # [L, I, I]
    contrib_col = jnp.sum(contrib, axis=1)            # per-column counts
    total_num_contributors = jnp.sum(contrib)
    total_A_gt1 = total_num_contributors

    r2_gt99 = r2 > 0.99
    total_num_contributors_gt99 = jnp.sum(contrib_col * r2_gt99)
    total_r2_gt99 = jnp.sum(r2_gt99)

    # Cosine-similarity stats from the gram matrix.
    col_norm = jnp.sqrt(h_sq_sum)                     # [L, I] = h.norm(dim=0)
    sim = gram / (col_norm[:, :, None] * col_norm[:, None, :] + 1e-6)
    sim = jnp.where(eye[None] > 0, 0.0, sim)          # zero diagonal
    cos_gt9 = (jnp.sum(sim > 0.9, axis=2) > 0).astype(jnp.int32)
    cos_gt99 = (jnp.sum(sim > 0.99, axis=2) > 0).astype(jnp.int32)

    total_sim_gt9 = jnp.sum(cos_gt9)
    total_sim_r2_gt9 = jnp.sum(cos_gt9 * (r2 > 0.9))
    total_sim_gt99 = jnp.sum(cos_gt99)
    total_sim_r2_gt99 = jnp.sum(cos_gt99 * (r2 > 0.99))

    tn = total_nnz_neurons.astype(jnp.float32)
    total_neurons = L * I
    total_A_numel = L * I * I

    stats = {
        'mean': jnp.sum(r2) / tn,
        'gt99': jnp.sum(r2 > 0.99) / tn,
        'gt90': jnp.sum(r2 > 0.9) / tn,
        'sim_gt90': total_sim_gt9 / tn,
        'sim_gt99': total_sim_gt99 / tn,
        # 0/0 yields nan, just like the torch reference.
        'perc_cos_also_r2_gt90': total_sim_r2_gt9 / total_sim_gt9,
        'perc_cos_also_r2_gt99': total_sim_r2_gt99 / total_sim_gt99,
        'perc_r2_lt0': total_lt_0 / tn,
        'mean_contr': total_num_contributors / total_neurons,
        'mean_contr_gt99': jnp.where(
            total_r2_gt99 > 0,
            total_num_contributors_gt99 / jnp.maximum(total_r2_gt99, 1),
            0.0),
        'perc_A_gt01': total_num_contributors / total_A_numel,
        'perc_A_gt1': total_A_gt1 / total_A_numel,
    }
    return r2, cos_gt9, cos_gt99, stats


class LinearSpanRegularizerJax:
    """JAX/Pallas port of LinearSpanRegularizer.forward."""

    def __init__(self, intermediate_size, num_layers, running_r2_mult=1.0,
                 key=None, tile_t=512):
        self.intermediate_size = intermediate_size
        self.num_layers = num_layers
        self.running_r2_mult = running_r2_mult
        self.tile_t = tile_t
        # Module __init__ uses zeros; zeros make every stat degenerate, so a
        # deterministic small random init is allowed for testing (same shapes).
        if key is None:
            self.As = jnp.zeros(
                (num_layers, intermediate_size, intermediate_size), jnp.float32)
        else:
            self.As = 0.05 * jax.random.normal(
                key, (num_layers, intermediate_size, intermediate_size),
                dtype=jnp.float32)
        # running_r2 EMA state, host-side dict like the torch defaultdict.
        # TODO(synk): thread as explicit functional state if forward is ever
        #             wrapped in jax.jit end-to-end.
        self.r2s = {}

    def forward(self, hidden_outputs, total_nnz_neurons, print_stats=False):
        assert len(hidden_outputs) == self.num_layers
        L = self.num_layers

        # Keep h in its native dtype; the kernel accumulates in f32.
        h_stack = jnp.stack([o.reshape(-1, o.shape[-1]) for o in hidden_outputs])

        total_norm, raw_r2, gram, h_sq_sum, a_masked = _span_core(
            h_stack, self.As, tile_t=self.tile_t)

        if self.running_r2_mult != 1:
            rows = []
            for n in range(L):
                key_name = str(n) + 'running_r2'
                if key_name not in self.r2s:
                    self.r2s[key_name] = self.running_r2_mult * raw_r2[n]
                else:
                    self.r2s[key_name] = (
                        (1 - self.running_r2_mult) * self.r2s[key_name]
                        + self.running_r2_mult * raw_r2[n])
                rows.append(self.r2s[key_name])
            r2_in = jnp.stack(rows)
        else:
            r2_in = raw_r2

        r2, cos_gt9, cos_gt99, stats = _finish_stats(
            r2_in, gram, h_sq_sum, a_masked,
            jnp.asarray(total_nnz_neurons, jnp.float32))

        stats = dict(stats)
        stats['r2s'] = [r2[n] for n in range(L)]

        if print_stats:
            for n in range(L):
                rn, c9, c99 = r2[n], cos_gt9[n], cos_gt99[n]
                nz = rn[rn != 0]
                print('span reg', n, 'mean', float(rn.mean()), 'max', float(rn.max()),
                      'nzmin', float(nz.min()) if nz.size > 0 else None,
                      'var', float(jnp.var(rn, ddof=1)))
                print('span reg', n, '>.99', int(jnp.sum(rn > 0.99)),
                      '>.95', int(jnp.sum(rn > 0.95)), '>.90', int(jnp.sum(rn > 0.9)))
                print('cos_gt9', int(jnp.sum(c9)),
                      'sim_r2_gt9', int(jnp.sum(c9 * (rn > 0.9))),
                      '>.90', int(jnp.sum(rn > 0.9)))
                # torch reference reuses cos_gt9 in this line (kept for parity)
                print('cos_gt99', int(jnp.sum(c99)),
                      'sim_r2_gt99', int(jnp.sum(c9 * (rn > 0.99))),
                      '>.99', int(jnp.sum(rn > 0.99)))

        return total_norm, stats


if __name__ == "__main__":
    key = jax.random.PRNGKey(0)
    batch, seq, intermediate = 2, 8, 128
    num_layers = 2

    k_h, k_a, k_b = jax.random.split(key, 3)
    h_keys = jax.random.split(k_h, num_layers)
    hidden_outputs = [
        jax.random.normal(h_keys[n], (batch, seq, intermediate), dtype=jnp.float32)
        for n in range(num_layers)
    ]

    reg = LinearSpanRegularizerJax(intermediate, num_layers,
                                   running_r2_mult=1.0, key=k_a)
    total_nnz_neurons = num_layers * intermediate

    total_norm, stats = reg.forward(hidden_outputs, total_nnz_neurons,
                                    print_stats=False)
    jax.block_until_ready(total_norm)
    jax.block_until_ready(stats['mean'])
    jax.block_until_ready(stats['r2s'][-1])

    # Sanity-check the algebraic total_norm against the direct torch-style math.
    eye = jnp.eye(intermediate, dtype=jnp.float32)
    ref_norm = 0.0
    for n in range(num_layers):
        A = reg.As[n] * (1.0 - eye)
        h = hidden_outputs[n].reshape(-1, intermediate)
        s = h @ A - h
        ref_norm = ref_norm + jnp.mean(s ** 2)
    assert jnp.abs(total_norm - ref_norm) <= 5e-2 * jnp.abs(ref_norm) + 1e-3

    # Exercise the column-blocked gram path (v7x / large-I fallback) on a shape
    # with nj > 1 and a ragged last T-tile (tests the in-kernel row mask).
    hb = jax.random.normal(k_b, (2, 40, 256), dtype=jnp.float32)
    g_blk = span_layer_gram(hb, tile_t=32, gram_col_tile=128, force_blocked=True)
    g_ref = jnp.einsum('ltd,lte->lde', hb, hb, precision=lax.Precision.HIGHEST)
    jax.block_until_ready(g_blk)
    assert jnp.allclose(g_blk, g_ref, rtol=5e-2, atol=0.25)

    print("KERNEL_OK")
</pallas_src>

<mosaic_0001>
module attributes {stable_mosaic.version = 11 : i64} {
  func.func @_gram_kernel(%arg0: i32, %arg1: i32, %arg2: memref<1x16x128xf32, #tpu.memory_space<vmem>>, %arg3: memref<1x128x128xf32, #tpu.memory_space<vmem>>) attributes {dimension_semantics = [#tpu.dimension_semantics<parallel>, #tpu.dimension_semantics<arbitrary>], iteration_bounds = array<i64: 2, 1>, scalar_prefetch = 0 : i64, scratch_operands = 0 : i64, tpu.core_type = #tpu.core_type<tc>, window_params = [{transform_indices = @transform_0, window_bounds = array<i64: 1, 16, 128>}, {transform_indices = @transform_1, window_bounds = array<i64: 1, 128, 128>}]} {
    %c0_i32 = arith.constant 0 : i32
    %0 = arith.cmpi eq, %arg1, %c0_i32 : i32
    %1 = arith.extui %0 : i1 to i32
    %c0_i32_0 = arith.constant 0 : i32
    %2 = arith.cmpi ne, %1, %c0_i32_0 : i32
    scf.if %2 {
      %cst_9 = arith.constant 0.000000e+00 : f32
      %12 = vector.broadcast %cst_9 : f32 to vector<128x128xf32>
      %c0_10 = arith.constant 0 : index
      %c0_11 = arith.constant 0 : index
      %c0_12 = arith.constant 0 : index
      %13 = vector.load %arg3[%c0_10, %c0_11, %c0_12] : memref<1x128x128xf32, #tpu.memory_space<vmem>>, vector<1x128x128xf32>
      %14 = vector.shape_cast %13 : vector<1x128x128xf32> to vector<128x128xf32>
      %15 = vector.shape_cast %12 : vector<128x128xf32> to vector<1x128x128xf32>
      tpu.vector_store %arg3[%c0_10, %c0_11, %c0_12], %15 {strides = array<i32>} : memref<1x128x128xf32, #tpu.memory_space<vmem>>, vector<1x128x128xf32>,
    } else {
    }
    %c0 = arith.constant 0 : index
    %c0_1 = arith.constant 0 : index
    %c0_2 = arith.constant 0 : index
    %3 = vector.load %arg2[%c0, %c0_1, %c0_2] : memref<1x16x128xf32, #tpu.memory_space<vmem>>, vector<1x16x128xf32>
    %4 = vector.shape_cast %3 : vector<1x16x128xf32> to vector<16x128xf32>
    %c0_3 = arith.constant 0 : index
    %c0_4 = arith.constant 0 : index
    %c0_5 = arith.constant 0 : index
    %5 = vector.load %arg3[%c0_3, %c0_4, %c0_5] : memref<1x128x128xf32, #tpu.memory_space<vmem>>, vector<1x128x128xf32>
    %6 = vector.shape_cast %5 : vector<1x128x128xf32> to vector<128x128xf32>
    %cst = arith.constant dense<0.000000e+00> : vector<128x128xf32>
    %7 = tpu.matmul %4, %4, %cst {dimension_numbers = #tpu.dot_dimension_numbers<[0], [0], [1], [1], [0, 1, 1, 1], [], []>} : vector<16x128xf32>, vector<16x128xf32>, vector<128x128xf32> -> vector<128x128xf32>
    %8 = arith.addf %6, %7 : vector<128x128xf32>
    %c0_6 = arith.constant 0 : index
    %c0_7 = arith.constant 0 : index
    %c0_8 = arith.constant 0 : index
    %9 = vector.load %arg3[%c0_6, %c0_7, %c0_8] : memref<1x128x128xf32, #tpu.memory_space<vmem>>, vector<1x128x128xf32>
    %10 = vector.shape_cast %9 : vector<1x128x128xf32> to vector<128x128xf32>
    %11 = vector.shape_cast %8 : vector<128x128xf32> to vector<1x128x128xf32>
    tpu.vector_store %arg3[%c0_6, %c0_7, %c0_8], %11 {strides = array<i32>} : memref<1x128x128xf32, #tpu.memory_space<vmem>>, vector<1x128x128xf32>,
    return
  }
  func.func @transform_0(%arg0: i32, %arg1: i32) -> (i32, i32, i32) {
    %c0_i32 = arith.constant 0 : i32
    %c0_i32_0 = arith.constant 0 : i32
    return %arg0, %arg1, %c0_i32 : i32, i32, i32
  }
  func.func @transform_1(%arg0: i32, %arg1: i32) -> (i32, i32, i32) {
    %c0_i32 = arith.constant 0 : i32
    %c0_i32_0 = arith.constant 0 : i32
    %c0_i32_1 = arith.constant 0 : i32
    return %arg0, %c0_i32, %c0_i32_0 : i32, i32, i32
  }
}

</mosaic_0001>

<llo_original>
// kernel: _span_core.1
$region0: #{_span_core.1}
  #allocation0 [shape = 'u32[]', space=smem, size = 0x4, offset = 0x4, fixed_abs, tag = 'smem constant byte address 0x4 - core index']
  #allocation1 [shape = 'u32[72,128]{1,0:T(1,128)}', space=vmem, size = 0x9000, scoped, tag = 'internal scratch']
  %s0 = inlined_call_operand.hbm [shape: f32[2,16,128], index: 0, kind: input, shape index: {}]
  %s1 = inlined_call_operand.vmem [shape: f32[2,128,128], index: 1, kind: output, shape index: {}]
  %s2 = sld [smem:[#allocation0]]
  $region45: #{_span_core.1} parent=0
    _
  %s4 = ssub.s32 1, %s2
  %s5 = scalar_select 0, %s4, %s2
  $region1: #{_span_core.1} parent=0
    #allocation2 [shape = 'u8[16384]{0}', space=vmem, size = 0x4000, scoped, tag = 'input window, operand 0']
    #allocation3 [shape = 's32[2]{0}', space=sflag, size = 0x8, scoped, tag = 'scoped memory for _span_core.1']
    %6 = vsyncpa [#allocation3], 0
    %s7 = scalar_lea.sflag [#allocation3], 1
    %8 = vsyncpa %s7, 0
    loop: start=0, step=1, limit=4
    $region2: #{_span_core.1} parent=1 // loop_pre_header
      _
    $region3: #{_span_core.1} parent=1 // loop_header
      %s10 = sphi 0, %s14
      %p11 = scmp.ge.s32.totalorder %s10, 4
      %s17 = sphi 0, %s29
      %s18 = sphi 0, %s25
      %s19 = sphi 0, %s17
      %s20 = sphi 0, %s18
      %s21 = sphi 0, %s19
      %s22 = sphi 0, %s20
      %s34 = sphi 0, %s36
      %s37 = sphi 0, %s34
      %s38 = sphi 0, %s37
      %s54 = sphi 0, %s38
      %s60 = sphi 0, %s62
      %s63 = sphi 0, %s60
      %s64 = sphi 0, %s63
      %s80 = sphi 0, %s64
    $region4: #{_span_core.1} parent=1 // loop_header_branch
      %13 = sbr.rel (%p11) target = $region8
    $region5: #{_span_core.1} parent=1 // loop_body
      %s15 = ssub.s32 %s10, 1
      %s16 = ssub.s32 %s10, 2
      %s23 = sadd.s32 1, %s18
      %p24 = scmp.ge.s32.totalorder %s23, 1
      %s25 = scalar_select %p24, 0, %s23
      %s26 = sadd.s32 1, %s17
      %s27 = scalar_select %p24, %s26, %s17
      %p28 = scmp.ge.s32.totalorder %s27, 2
      %s29 = scalar_select %p28, 0, %s27
      %s30 = ssub.s32 %s17, %s29
      %s31 = ssub.s32 %s18, %s25
      %s32 = sor.u32 %s30, %s31
      %p33 = scmp.eq.s32.totalorder %s32, 0
      %s35 = sadd.s32 %s34, 1
      %s36 = scalar_select %p33, %s34, %s35
      %p39 = pneg %p33
      %p40 = scmp.eq.s32.totalorder %s10, 1
      %p41 = por %p39, %p40
      %p42 = scmp.ne.s32.totalorder %s34, %s37
      %p43 = scmp.eq.s32.totalorder %s10, 0
      %p44 = por %p42, %p43
      %p45 = scmp.ne.s32.totalorder %s34, %s37
      %p46 = scmp.eq.s32.totalorder %s15, 1
      %p47 = por %p45, %p46
      %p48 = scmp.ne.s32.totalorder %s37, %s38
      %p49 = scmp.eq.s32.totalorder %s15, 0
      %p50 = por %p48, %p49
      %p51 = scmp.ne.s32.totalorder %s37, %s38
      %p52 = scmp.eq.s32.totalorder %s16, 1
      %p53 = por %p51, %p52
      %p55 = scmp.ne.s32.totalorder %s38, %s54
      %p56 = scmp.eq.s32.totalorder %s16, 0
      %p57 = por %p55, %p56
      %s58 = ssub.s32 %s17, %s29
      %p59 = scmp.eq.s32.totalorder %s58, 0
      %s61 = sadd.s32 %s60, 1
      %s62 = scalar_select %p59, %s60, %s61
      %p65 = pneg %p59
      %p66 = scmp.eq.s32.totalorder %s10, 1
      %p67 = por %p65, %p66
      %p68 = scmp.ne.s32.totalorder %s60, %s63
      %p69 = scmp.eq.s32.totalorder %s10, 0
      %p70 = por %p68, %p69
      %p71 = scmp.ne.s32.totalorder %s60, %s63
      %p72 = scmp.eq.s32.totalorder %s15, 1
      %p73 = por %p71, %p72
      %p74 = scmp.ne.s32.totalorder %s63, %s64
      %p75 = scmp.eq.s32.totalorder %s15, 0
      %p76 = por %p74, %p75
      %p77 = scmp.ne.s32.totalorder %s63, %s64
      %p78 = scmp.eq.s32.totalorder %s16, 1
      %p79 = por %p77, %p78
      %p81 = scmp.ne.s32.totalorder %s64, %s80
      %p82 = scmp.eq.s32.totalorder %s16, 0
      %p83 = por %p81, %p82
      %p84 = scmp.le.s32.totalorder 1, %s10
      %p85 = scmp.lt.s32.totalorder %s10, 3
      %p86 = pnand %p84, %p85
      %p87 = pneg %p86
      // Predicated region
      $region9: #{_span_core.1} parent=5 // pred_check
        _
      $region10: #{_span_core.1} parent=5 // pred_check_branch
        %89 = sbr.rel (%p86) target = $region12
      $region11: #{_span_core.1} parent=5 // pred_region
        %s90 = ssub.s32 %s10, 1
      $region12: #{_span_core.1} parent=5 // pred_fallthru
        _
      %p91 = scmp.lt.s32.totalorder %s10, 2
      // Predicated region
      $region13: #{_span_core.1} parent=5 // pred_check
        %p92 = pneg %p91
      $region14: #{_span_core.1} parent=5 // pred_check_branch
        %94 = sbr.rel (%p92) target = $region16
      $region15: #{_span_core.1} parent=5 // pred_region
        // Predicated region
        $region17: #{_span_core.1} parent=15 // pred_check
          %p95 = pneg %p44
        $region18: #{_span_core.1} parent=15 // pred_check_branch
          %97 = sbr.rel (%p95) target = $region20
        $region19: #{_span_core.1} parent=15 // pred_region
          %s98 = sand.u32 %s34, 1
          %s99 = scalar_lea.sflag [#allocation3], %s98
          %s100 = sand.u32 %s34, 1
          %s101 = smul.addr %s100, 16
          %s102 = scalar_lea.vmem [#allocation2], %s101
          %s103 = smul.u32 2, %s18
          %105 = vsyncadd %s99, 0
          %s106 = smul.addr %s17, 2
          %s107 = sadd.s32 %s103, %s106
          %s108 = smul.addr %s107, 8
          %s109 = scalar_lea.hbm %s0, %s108
          %s110 = sshll.u32 %s109, 4
          %s111 = int_to_ptr.hbm [resolvable:$true] %s110
          %s112 = sshll.u32 %s102, 4
          %s113 = int_to_ptr.vmem [resolvable:$true] %s112
          %118 = dma.hbm_to_vmem [thread:$0]  %s111, 256, %s113, %s99, 128, 128, 8
        $region20: #{_span_core.1} parent=15 // pred_fallthru
          _
      $region16: #{_span_core.1} parent=5 // pred_fallthru
        _
      %p119 = scmp.le.s32.totalorder 1, %s10
      %p120 = scmp.lt.s32.totalorder %s10, 3
      %p121 = pnand %p119, %p120
      %p122 = pneg %p121
      // Predicated region
      $region21: #{_span_core.1} parent=5 // pred_check
        _
      $region22: #{_span_core.1} parent=5 // pred_check_branch
        %124 = sbr.rel (%p121) target = $region24
      $region23: #{_span_core.1} parent=5 // pred_region
        %s125 = ssub.s32 %s10, 1
        %s126 = sand.u32 %s37, 1
        %s127 = scalar_lea.sflag [#allocation3], %s126
        %s128 = sand.u32 %s37, 1
        %s129 = smul.addr %s128, 16
        %s130 = scalar_lea.vmem [#allocation2], %s129
        // Predicated region
        $region25: #{_span_core.1} parent=23 // pred_check
          %p131 = pneg %p50
        $region26: #{_span_core.1} parent=23 // pred_check_branch
          %133 = sbr.rel (%p131) target = $region28
        $region27: #{_span_core.1} parent=23 // pred_region
          %135 = dma.done %s127, 256
        $region28: #{_span_core.1} parent=23 // pred_fallthru
          _
        %s136 = sand.u32 %s37, 1
        %s137 = scalar_lea.sflag [#allocation3], %s136
        %s138 = sand.u32 %s37, 1
        %s139 = smul.addr %s138, 16
        %s140 = scalar_lea.vmem [#allocation2], %s139
        %p141 = pneg %p50
        %p142 = pneg %p47
        %p143 = pneg %p76
        %p144 = pneg %p73
        %p145 = scmp.lt.s32.totalorder %s19, 1
        %s146 = scalar_select %p145, %s19, 1
        %s147 = smul.addr %s146, 16
        %s148 = smul.addr %s147, 8
        %s149 = scalar_lea.vmem %s1, %s148
        %s150 = smul.u32 2, %s20
        %p151 = scmp.lt.s32.totalorder %s19, 1
        %s152 = scalar_select %p151, %s19, 1
        %s153 = smul.addr %s152, 16
        %s154 = smul.addr %s153, 8
        %s155 = scalar_lea.vmem %s1, %s154
        %p156 = scmp.eq.s32.totalorder %s20, 0
        // Predicated region
        $region29: #{_span_core.1} parent=23 // pred_check
          %p157 = pneg %p156
        $region30: #{_span_core.1} parent=23 // pred_check_branch
          %159 = sbr.rel (%p157) target = $region32
        $region31: #{_span_core.1} parent=23 // pred_region
          %160 = vst [vmem:[%s155] sm:$0xff] 0.0
          %161 = vst [vmem:[%s155 + $0x8] sm:$0xff] 0.0
          %162 = vst [vmem:[%s155 + $0x10] sm:$0xff] 0.0
          %163 = vst [vmem:[%s155 + $0x18] sm:$0xff] 0.0
          %164 = vst [vmem:[%s155 + $0x20] sm:$0xff] 0.0
          %165 = vst [vmem:[%s155 + $0x28] sm:$0xff] 0.0
          %166 = vst [vmem:[%s155 + $0x30] sm:$0xff] 0.0
          %167 = vst [vmem:[%s155 + $0x38] sm:$0xff] 0.0
          %168 = vst [vmem:[%s155 + $0x40] sm:$0xff] 0.0
          %169 = vst [vmem:[%s155 + $0x48] sm:$0xff] 0.0
          %170 = vst [vmem:[%s155 + $0x50] sm:$0xff] 0.0
          %171 = vst [vmem:[%s155 + $0x58] sm:$0xff] 0.0
          %172 = vst [vmem:[%s155 + $0x60] sm:$0xff] 0.0
          %173 = vst [vmem:[%s155 + $0x68] sm:$0xff] 0.0
          %174 = vst [vmem:[%s155 + $0x70] sm:$0xff] 0.0
          %175 = vst [vmem:[%s155 + $0x78] sm:$0xff] 0.0
        $region32: #{_span_core.1} parent=23 // pred_fallthru
          _
        %v176 = vld [vmem:[%s130] sm:$0xff]
        %v177 = vld [vmem:[%s130 + $0x8] sm:$0xff]
        %v178 = vld [vmem:[%s155] sm:$0xff]
        %v179 = vld [vmem:[%s155 + $0x8] sm:$0xff]
        %v180 = vld [vmem:[%s155 + $0x10] sm:$0xff]
        %v181 = vld [vmem:[%s155 + $0x18] sm:$0xff]
        %v182 = vld [vmem:[%s155 + $0x20] sm:$0xff]
        %v183 = vld [vmem:[%s155 + $0x28] sm:$0xff]
        %v184 = vld [vmem:[%s155 + $0x30] sm:$0xff]
        %v185 = vld [vmem:[%s155 + $0x38] sm:$0xff]
        %v186 = vld [vmem:[%s155 + $0x40] sm:$0xff]
        %v187 = vld [vmem:[%s155 + $0x48] sm:$0xff]
        %v188 = vld [vmem:[%s155 + $0x50] sm:$0xff]
        %v189 = vld [vmem:[%s155 + $0x58] sm:$0xff]
        %v190 = vld [vmem:[%s155 + $0x60] sm:$0xff]
        %v191 = vld [vmem:[%s155 + $0x68] sm:$0xff]
        %v192 = vld [vmem:[%s155 + $0x70] sm:$0xff]
        %v193 = vld [vmem:[%s155 + $0x78] sm:$0xff]
        %194 = vxpose.xlu0.b32.start [1/16] %v176, 128
        %195 = vxpose.xlu0.b32.cont [2/16] %v177, 128
        %196 = vxpose.xlu0.b32.cont [3/16] 0.0, 128
        %197 = vxpose.xlu0.b32.cont [4/16] 0.0, 128
        %198 = vxpose.xlu0.b32.cont [5/16] 0.0, 128
        %199 = vxpose.xlu0.b32.cont [6/16] 0.0, 128
        %200 = vxpose.xlu0.b32.cont [7/16] 0.0, 128
        %201 = vxpose.xlu0.b32.cont [8/16] 0.0, 128
        %202 = vxpose.xlu0.b32.cont [9/16] 0.0, 128
        %203 = vxpose.xlu0.b32.cont [10/16] 0.0, 128
        %204 = vxpose.xlu0.b32.cont [11/16] 0.0, 128
        %205 = vxpose.xlu0.b32.cont [12/16] 0.0, 128
        %206 = vxpose.xlu0.b32.cont [13/16] 0.0, 128
        %207 = vxpose.xlu0.b32.cont [14/16] 0.0, 128
        %208 = vxpose.xlu0.b32.cont [15/16] 0.0, 128
        %209 = vxpose.xlu0.b32.end [16/16] 0.0, 128
        %v210 = vpop.trf.xlu0
        %v211 = vpop.trf.xlu0
        %v212 = vpop.trf.xlu0
        %v213 = vpop.trf.xlu0
        %v214 = vpop.trf.xlu0
        %v215 = vpop.trf.xlu0
        %v216 = vpop.trf.xlu0
        %v217 = vpop.trf.xlu0
        %v218 = vpop.trf.xlu0
        %v219 = vpop.trf.xlu0
        %v220 = vpop.trf.xlu0
        %v221 = vpop.trf.xlu0
        %v222 = vpop.trf.xlu0
        %v223 = vpop.trf.xlu0
        %v224 = vpop.trf.xlu0
        %v225 = vpop.trf.xlu0
        %vm226 = vcmask 130048
        %v228 = vsel %vm226, %v210, 0
        %v231 = vsel %vm226, %v211, 0
        %v234 = vsel %vm226, %v212, 0
        %v237 = vsel %vm226, %v213, 0
        %v240 = vsel %vm226, %v214, 0
        %v243 = vsel %vm226, %v215, 0
        %v246 = vsel %vm226, %v216, 0
        %v249 = vsel %vm226, %v217, 0
        %v252 = vsel %vm226, %v218, 0
        %v255 = vsel %vm226, %v219, 0
        %v258 = vsel %vm226, %v220, 0
        %v261 = vsel %vm226, %v221, 0
        %v264 = vsel %vm226, %v222, 0
        %v267 = vsel %vm226, %v223, 0
        %v270 = vsel %vm226, %v224, 0
        %v273 = vsel %vm226, %v225, 0
        %275 = vmatpush.msra.mxu0 0.0
        %276 = vmatpush.msra.mxu0 0.0
        %277 = vmatpush.msra.mxu0 0.0
        %278 = vmatpush.msra.mxu0 0.0
        %279 = vmatpush.msra.mxu0 0.0
        %280 = vmatpush.msra.mxu0 0.0
        %281 = vmatpush.msra.mxu0 0.0
        %282 = vmatpush.msra.mxu0 0.0
        %283 = vmatpush.msra.mxu0 0.0
        %284 = vmatpush.msra.mxu0 0.0
        %285 = vmatpush.msra.mxu0 0.0
        %286 = vmatpush.msra.mxu0 0.0
        %287 = vmatpush.msra.mxu0 0.0
        %288 = vmatpush.msra.mxu0 0.0
        %289 = vmatpush.msra.mxu0 %v177
        %290 = vmatpush.msra.mxu0 %v176
        %291 = vmatmul.f32.gmra.mxu0 %v228
        %v292 = vpop.f32.mrf.mxu0
        %v293 = vadd.f32 0.0, %v292
        %294 = vmatmul.f32.gmra.mxu0 %v231
        %v295 = vpop.f32.mrf.mxu0
        %v296 = vadd.f32 0.0, %v295
        %297 = vmatmul.f32.gmra.mxu0 %v234
        %v298 = vpop.f32.mrf.mxu0
        %v299 = vadd.f32 0.0, %v298
        %300 = vmatmul.f32.gmra.mxu0 %v237
        %v301 = vpop.f32.mrf.mxu0
        %v302 = vadd.f32 0.0, %v301
        %303 = vmatmul.f32.gmra.mxu0 %v240
        %v304 = vpop.f32.mrf.mxu0
        %v305 = vadd.f32 0.0, %v304
        %306 = vmatmul.f32.gmra.mxu0 %v243
        %v307 = vpop.f32.mrf.mxu0
        %v308 = vadd.f32 0.0, %v307
        %309 = vmatmul.f32.gmra.mxu0 %v246
        %v310 = vpop.f32.mrf.mxu0
        %v311 = vadd.f32 0.0, %v310
        %312 = vmatmul.f32.gmra.mxu0 %v249
        %v313 = vpop.f32.mrf.mxu0
        %v314 = vadd.f32 0.0, %v313
        %315 = vmatmul.f32.gmra.mxu0 %v252
        %v316 = vpop.f32.mrf.mxu0
        %v317 = vadd.f32 0.0, %v316
        %318 = vmatmul.f32.gmra.mxu0 %v255
        %v319 = vpop.f32.mrf.mxu0
        %v320 = vadd.f32 0.0, %v319
        %321 = vmatmul.f32.gmra.mxu0 %v258
        %v322 = vpop.f32.mrf.mxu0
        %v323 = vadd.f32 0.0, %v322
        %324 = vmatmul.f32.gmra.mxu0 %v261
        %v325 = vpop.f32.mrf.mxu0
        %v326 = vadd.f32 0.0, %v325
        %327 = vmatmul.f32.gmra.mxu0 %v264
        %v328 = vpop.f32.mrf.mxu0
        %v329 = vadd.f32 0.0, %v328
        %330 = vmatmul.f32.gmra.mxu0 %v267
        %v331 = vpop.f32.mrf.mxu0
        %v332 = vadd.f32 0.0, %v331
        %333 = vmatmul.f32.gmra.mxu0 %v270
        %v334 = vpop.f32.mrf.mxu0
        %v335 = vadd.f32 0.0, %v334
        %336 = vmatmul.f32.gmra.mxu0 %v273
        %v337 = vpop.f32.mrf.mxu0
        %v338 = vadd.f32 0.0, %v337
        %339 = vdwg.mxu0
        %v340 = vadd.f32 %v178, %v293
        %v341 = vadd.f32 %v179, %v296
        %v342 = vadd.f32 %v180, %v299
        %v343 = vadd.f32 %v181, %v302
        %v344 = vadd.f32 %v182, %v305
        %v345 = vadd.f32 %v183, %v308
        %v346 = vadd.f32 %v184, %v311
        %v347 = vadd.f32 %v185, %v314
        %v348 = vadd.f32 %v186, %v317
        %v349 = vadd.f32 %v187, %v320
        %v350 = vadd.f32 %v188, %v323
        %v351 = vadd.f32 %v189, %v326
        %v352 = vadd.f32 %v190, %v329
        %v353 = vadd.f32 %v191, %v332
        %v354 = vadd.f32 %v192, %v335
        %v355 = vadd.f32 %v193, %v338
        %356 = vst [vmem:[%s155] sm:$0xff] %v340
        %357 = vst [vmem:[%s155 + $0x8] sm:$0xff] %v341
        %358 = vst [vmem:[%s155 + $0x10] sm:$0xff] %v342
        %359 = vst [vmem:[%s155 + $0x18] sm:$0xff] %v343
        %360 = vst [vmem:[%s155 + $0x20] sm:$0xff] %v344
        %361 = vst [vmem:[%s155 + $0x28] sm:$0xff] %v345
        %362 = vst [vmem:[%s155 + $0x30] sm:$0xff] %v346
        %363 = vst [vmem:[%s155 + $0x38] sm:$0xff] %v347
        %364 = vst [vmem:[%s155 + $0x40] sm:$0xff] %v348
        %365 = vst [vmem:[%s155 + $0x48] sm:$0xff] %v349
        %366 = vst [vmem:[%s155 + $0x50] sm:$0xff] %v350
        %367 = vst [vmem:[%s155 + $0x58] sm:$0xff] %v351
        %368 = vst [vmem:[%s155 + $0x60] sm:$0xff] %v352
        %369 = vst [vmem:[%s155 + $0x68] sm:$0xff] %v353
        %370 = vst [vmem:[%s155 + $0x70] sm:$0xff] %v354
        %371 = vst [vmem:[%s155 + $0x78] sm:$0xff] %v355
        %p372 = scmp.lt.s32.totalorder %s19, 1
        %s373 = scalar_select %p372, %s19, 1
        %s374 = smul.addr %s373, 16
        %s375 = smul.addr %s374, 8
        %s376 = scalar_lea.vmem %s1, %s375
        // Predicated region
        $region33: #{_span_core.1} parent=23 // pred_check
          %p377 = pneg %p73
        $region34: #{_span_core.1} parent=23 // pred_check_branch
          %379 = sbr.rel (%p377) target = $region36
        $region35: #{_span_core.1} parent=23 // pred_region
          _
        $region36: #{_span_core.1} parent=23 // pred_fallthru
          _
      $region24: #{_span_core.1} parent=5 // pred_fallthru
        _
      %p380 = scmp.le.s32.totalorder 2, %s10
      // Predicated region
      $region37: #{_span_core.1} parent=5 // pred_check
        %p381 = pneg %p380
      $region38: #{_span_core.1} parent=5 // pred_check_branch
        %383 = sbr.rel (%p381) target = $region40
      $region39: #{_span_core.1} parent=5 // pred_region
        %s384 = ssub.s32 %s10, 2
        // Predicated region
        $region41: #{_span_core.1} parent=39 // pred_check
          %p385 = pneg %p79
        $region42: #{_span_core.1} parent=39 // pred_check_branch
          %387 = sbr.rel (%p385) target = $region44
        $region43: #{_span_core.1} parent=39 // pred_region
          %p388 = scmp.lt.s32.totalorder %s21, 1
          %s389 = scalar_select %p388, %s21, 1
          %s390 = smul.addr %s389, 16
          %s391 = smul.addr %s390, 8
          %s392 = scalar_lea.vmem %s1, %s391
        $region44: #{_span_core.1} parent=39 // pred_fallthru
          _
      $region40: #{_span_core.1} parent=5 // pred_fallthru
        _
    $region6: #{_span_core.1} parent=1 // loop_footer
      %s14 = sadd.s32 1, %s10
    $region7: #{_span_core.1} parent=1 // loop_footer_branch
      %9 = sbr.rel target = $region3
    $region8: #{_span_core.1} parent=1 // loop_exit
      _
    %393 = vsyncpa [#allocation3], 1
    %s394 = scalar_lea.sflag [#allocation3], 1
    %395 = vsyncpa %s394, 1

</llo_original>
